<compile_context>
chip_gen: v7x
topology: tpu7x:2x2x1
jax: 0.10.0
libtpu: 0.0.40
codegen_flags: <defaults>
</compile_context>

<pallas_src>
import functools

import jax
import jax.numpy as jnp
from jax.experimental import pallas as pl
from jax.experimental.pallas import tpu as pltpu


def _round_up(v, m):
    return ((v + m - 1) // m) * m


def _cdiv(a, b):
    return -(-a // b)


def concat_linear_kernel(t_ref, x_ref, wx_ref, wt_ref, b_ref, o_ref):
    # MXU: (tm, dim_in) @ (dim_in, tn) -> (tm, tn), f32 accumulation.
    xw = jnp.dot(x_ref[...].astype(wx_ref.dtype), wx_ref[...],
                 preferred_element_type=jnp.float32)
    # Epilogue (VPU filler under the MXU): the "concatenated" t column + bias.
    #   (tm, 1) * (1, tn) + (1, tn)  ->  (tm, tn), f32
    epi = t_ref[...] * wt_ref[...] + b_ref[...]
    o_ref[...] = (xw + epi).astype(o_ref.dtype)


def prepare_concat_linear_params(weight, bias, *, use_bf16=False):
    """One-time parameter prep (do NOT call per forward).

    weight: PyTorch Linear weight, shape (dim_out, dim_in + 1)
    bias  : (dim_out,)
    Returns (wx, wt, b2, dim_out):
      wx: (dim_in, N_pad)  x-column weights, transposed & lane-padded
      wt: (1, N_pad)       time-column weights, lane-padded
      b2: (1, N_pad)       bias, lane-padded
      dim_out: true (un-padded) output width
    where N_pad = round_up(dim_out, 128).  Padding is zeros (exact).
    """
    w_t = jnp.asarray(weight, jnp.float32).T          # (dim_in+1, dim_out)
    dim_out = int(w_t.shape[1])
    n_pad = _round_up(dim_out, 128)
    wt = w_t[0:1, :]
    wx = w_t[1:, :]
    b2 = jnp.asarray(bias, jnp.float32).reshape(1, -1)
    if n_pad != dim_out:
        pad = ((0, 0), (0, n_pad - dim_out))
        wx = jnp.pad(wx, pad)
        wt = jnp.pad(wt, pad)
        b2 = jnp.pad(b2, pad)
    if use_bf16:
        wx = wx.astype(jnp.bfloat16)
    return wx, wt, b2, dim_out


def _vmem_budget_bytes():
    """Per-generation scoped-VMEM budget with headroom (v7x: ~45 MiB)."""
    cap = 64 * 1024 * 1024
    try:
        info = pltpu.get_tpu_info()
        cap = int(getattr(info, "vmem_capacity_bytes", cap) or cap)
    except Exception:
        pass
    cap = max(32 * 1024 * 1024, min(cap, 128 * 1024 * 1024))
    return int(0.70 * cap)


def _block_footprint(tm, tn, dim_in, wx_itemsize):
    """Double-buffered per-step VMEM bytes (t, x, wx, wt, b inputs + f32 out)."""
    return 2 * (4 * tm * (1 + dim_in)
                + wx_itemsize * dim_in * tn
                + 2 * 4 * tn
                + 4 * tm * tn)


def _select_tiles(B, dim_in, n_pad, wx_itemsize, budget):
    b8 = _round_up(B, 8)
    tm_want = min(1024 if B >= 2048 else 512, b8)
    # Prefer the whole (padded) dim_out as a single weight tile so x streams
    # from HBM exactly once; otherwise fall back to 128-aligned divisors.
    tn_cands = [n_pad] + [c for c in (2048, 1024, 512, 256, 128)
                          if c < n_pad and n_pad % c == 0]
    for tn in tn_cands:
        tm = tm_want
        while tm > 8 and _block_footprint(tm, tn, dim_in, wx_itemsize) > budget:
            tm = max(8, _round_up(tm // 2, 8))
        if (_block_footprint(tm, tn, dim_in, wx_itemsize) <= budget
                and (tm >= 64 or tm >= b8)):
            return tm, tn
    return 8, 128


@functools.partial(jax.jit, static_argnames=("dim_out", "tm", "tn"))
def concat_linear(t, x, wx, wt, b2, dim_out, *, tm=None, tn=None):
    """Forward of ConcatLinear.

    t : (B,), x : (B, dim_in)
    wx: (dim_in, N_pad), wt/b2: (1, N_pad) from prepare_concat_linear_params
    Returns (B, dim_out) float32.
    """
    B, dim_in = x.shape
    n_pad = wx.shape[1]
    wx_itemsize = jnp.dtype(wx.dtype).itemsize

    budget = _vmem_budget_bytes()
    tm_sel, tn_sel = _select_tiles(B, dim_in, n_pad, wx_itemsize, budget)
    tm = tm_sel if tm is None else tm
    tn = tn_sel if tn is None else tn

    n_n = n_pad // tn
    n_m = _cdiv(B, tm)

    # v7x has 2 TensorCores: make sure a small problem still yields >= 2 grid
    # steps along a parallel axis (a harmless extra step on 1-TC v5e/v6e).
    if n_n * n_m == 1 and B > 8:
        tm = _round_up(_cdiv(B, 2), 8)
        n_m = _cdiv(B, tm)

    t2 = t.reshape(B, 1).astype(jnp.float32)

    footprint = _block_footprint(tm, tn, dim_in, wx_itemsize)
    vmem_limit = int(min(budget,
                         max(int(1.5 * footprint) + (4 << 20), 16 << 20)))

    out = pl.pallas_call(
        concat_linear_kernel,
        out_shape=jax.ShapeDtypeStruct((B, n_pad), jnp.float32),
        grid_spec=pltpu.PrefetchScalarGridSpec(
            num_scalar_prefetch=0,
            # N (weight tile) outermost -> weight/bias tiles stay resident
            # across the batch sweep; with tn == n_pad the N axis is a single
            # step and x is streamed from HBM exactly once.
            grid=(n_n, n_m),
            in_specs=[
                pl.BlockSpec((tm, 1), lambda j, i: (i, 0)),        # t column
                pl.BlockSpec((tm, dim_in), lambda j, i: (i, 0)),   # x
                pl.BlockSpec((dim_in, tn), lambda j, i: (0, j)),   # wx
                pl.BlockSpec((1, tn), lambda j, i: (0, j)),        # wt
                pl.BlockSpec((1, tn), lambda j, i: (0, j)),        # bias
            ],
            out_specs=pl.BlockSpec((tm, tn), lambda j, i: (i, j)),
        ),
        compiler_params=pltpu.CompilerParams(
            dimension_semantics=("parallel", "parallel"),
            vmem_limit_bytes=vmem_limit,
        ),
    )(t2, x, wx, wt, b2)

    if n_pad != dim_out:
        out = out[:, :dim_out]       # only when dim_out isn't lane-aligned
    return out


if __name__ == "__main__":
    B, dim_in, dim_out = 8, 32, 32

    key = jax.random.PRNGKey(0)
    k_t, k_x, k_w, k_b = jax.random.split(key, 4)

    t = jax.random.uniform(k_t, (B,), dtype=jnp.float32)
    x = jax.random.normal(k_x, (B, dim_in), dtype=jnp.float32)

    # Deterministic PyTorch-style Linear init: U(-1/sqrt(fan_in), 1/sqrt(fan_in))
    fan_in = dim_in + 1
    bound = 1.0 / (fan_in ** 0.5)
    weight = jax.random.uniform(k_w, (dim_out, fan_in), dtype=jnp.float32,
                                minval=-bound, maxval=bound)
    bias = jax.random.uniform(k_b, (dim_out,), dtype=jnp.float32,
                              minval=-bound, maxval=bound)

    # Pure-JAX reference of the exact PyTorch semantics.
    tt = jnp.ones_like(x[:, :1]) * t[:, None]
    ttx = jnp.concatenate([tt, x], axis=1)
    ref = ttx @ weight.T + bias

    # f32 path (reference numerics).
    wx, wt, b2, d_out = prepare_concat_linear_params(weight, bias)
    out = jax.block_until_ready(concat_linear(t, x, wx, wt, b2, d_out))
    assert out.shape == (B, dim_out)
    assert jnp.allclose(out, ref, atol=1e-5, rtol=1e-5)

    # Optional bf16-weight path (halves wx HBM bytes; looser tolerance).
    wx16, wt16, b216, d_out16 = prepare_concat_linear_params(
        weight, bias, use_bf16=True)
    out16 = jax.block_until_ready(
        concat_linear(t, x, wx16, wt16, b216, d_out16))
    assert out16.shape == (B, dim_out)
    assert jnp.allclose(out16, ref, atol=5e-2, rtol=5e-2)

    print("KERNEL_OK")
</pallas_src>

<mosaic_0001>
module attributes {stable_mosaic.version = 11 : i64} {
  func.func @concat_linear_kernel(%arg0: i32, %arg1: i32, %arg2: memref<8x1xf32, #tpu.memory_space<vmem>>, %arg3: memref<8x32xf32, #tpu.memory_space<vmem>>, %arg4: memref<32x128xf32, #tpu.memory_space<vmem>>, %arg5: memref<1x128xf32, #tpu.memory_space<vmem>>, %arg6: memref<1x128xf32, #tpu.memory_space<vmem>>, %arg7: memref<8x128xf32, #tpu.memory_space<vmem>>) attributes {dimension_semantics = [#tpu.dimension_semantics<parallel>, #tpu.dimension_semantics<parallel>], iteration_bounds = array<i64: 1, 1>, scalar_prefetch = 0 : i64, scratch_operands = 0 : i64, tpu.core_type = #tpu.core_type<tc>, window_params = [{transform_indices = @transform_0, window_bounds = array<i64: 8, 1>}, {transform_indices = @transform_1, window_bounds = array<i64: 8, 32>}, {transform_indices = @transform_2, window_bounds = array<i64: 32, 128>}, {transform_indices = @transform_3, window_bounds = array<i64: 1, 128>}, {transform_indices = @transform_4, window_bounds = array<i64: 1, 128>}, {transform_indices = @transform_5, window_bounds = array<i64: 8, 128>}]} {
    %c0 = arith.constant 0 : index
    %c0_0 = arith.constant 0 : index
    %0 = vector.load %arg3[%c0, %c0_0] : memref<8x32xf32, #tpu.memory_space<vmem>>, vector<8x32xf32>
    %c0_1 = arith.constant 0 : index
    %c0_2 = arith.constant 0 : index
    %1 = vector.load %arg4[%c0_1, %c0_2] : memref<32x128xf32, #tpu.memory_space<vmem>>, vector<32x128xf32>
    %cst = arith.constant dense<0.000000e+00> : vector<8x128xf32>
    %2 = tpu.matmul %0, %1, %cst {dimension_numbers = #tpu.dot_dimension_numbers<[1], [0], [0], [1], [0, 0, 1, 1], [], []>} : vector<8x32xf32>, vector<32x128xf32>, vector<8x128xf32> -> vector<8x128xf32>
    %c0_3 = arith.constant 0 : index
    %c0_4 = arith.constant 0 : index
    %3 = vector.load %arg2[%c0_3, %c0_4] : memref<8x1xf32, #tpu.memory_space<vmem>>, vector<8x1xf32>
    %c0_5 = arith.constant 0 : index
    %c0_6 = arith.constant 0 : index
    %4 = vector.load %arg5[%c0_5, %c0_6] : memref<1x128xf32, #tpu.memory_space<vmem>>, vector<1x128xf32>
    %5 = vector.broadcast %3 : vector<8x1xf32> to vector<8x128xf32>
    %6 = vector.broadcast %4 : vector<1x128xf32> to vector<8x128xf32>
    %7 = arith.mulf %5, %6 : vector<8x128xf32>
    %c0_7 = arith.constant 0 : index
    %c0_8 = arith.constant 0 : index
    %8 = vector.load %arg6[%c0_7, %c0_8] : memref<1x128xf32, #tpu.memory_space<vmem>>, vector<1x128xf32>
    %9 = vector.broadcast %8 : vector<1x128xf32> to vector<8x128xf32>
    %10 = arith.addf %7, %9 : vector<8x128xf32>
    %11 = arith.addf %2, %10 : vector<8x128xf32>
    %c0_9 = arith.constant 0 : index
    %c0_10 = arith.constant 0 : index
    %12 = vector.load %arg7[%c0_9, %c0_10] : memref<8x128xf32, #tpu.memory_space<vmem>>, vector<8x128xf32>
    tpu.vector_store %arg7[%c0_9, %c0_10], %11 {strides = array<i32>} : memref<8x128xf32, #tpu.memory_space<vmem>>, vector<8x128xf32>,
    return
  }
  func.func @transform_0(%arg0: i32, %arg1: i32) -> (i32, i32) {
    %c0_i32 = arith.constant 0 : i32
    %c0_i32_0 = arith.constant 0 : i32
    return %arg1, %c0_i32 : i32, i32
  }
  func.func @transform_1(%arg0: i32, %arg1: i32) -> (i32, i32) {
    %c0_i32 = arith.constant 0 : i32
    %c0_i32_0 = arith.constant 0 : i32
    return %arg1, %c0_i32 : i32, i32
  }
  func.func @transform_2(%arg0: i32, %arg1: i32) -> (i32, i32) {
    %c0_i32 = arith.constant 0 : i32
    %c0_i32_0 = arith.constant 0 : i32
    return %c0_i32, %arg0 : i32, i32
  }
  func.func @transform_3(%arg0: i32, %arg1: i32) -> (i32, i32) {
    %c0_i32 = arith.constant 0 : i32
    %c0_i32_0 = arith.constant 0 : i32
    return %c0_i32, %arg0 : i32, i32
  }
  func.func @transform_4(%arg0: i32, %arg1: i32) -> (i32, i32) {
    %c0_i32 = arith.constant 0 : i32
    %c0_i32_0 = arith.constant 0 : i32
    return %c0_i32, %arg0 : i32, i32
  }
  func.func @transform_5(%arg0: i32, %arg1: i32) -> (i32, i32) {
    %c0_i32 = arith.constant 0 : i32
    return %arg1, %arg0 : i32, i32
  }
}

</mosaic_0001>

<llo_original>
// kernel: concat_linear.1
$region0: #{concat_linear.1}
  #allocation0 [shape = 'u32[]', space=smem, size = 0x4, offset = 0x4, fixed_abs, tag = 'smem constant byte address 0x4 - core index']
  #allocation1 [shape = 'u32[144,128]{1,0:T(1,128)}', space=vmem, size = 0x12000, scoped, tag = 'internal scratch']
  %s0 = inlined_call_operand.vmem [shape: f32[8,1], index: 0, kind: input, shape index: {}]
  %s1 = inlined_call_operand.vmem [shape: f32[8,32], index: 1, kind: input, shape index: {}]
  %s2 = inlined_call_operand.hbm [shape: f32[32,128], index: 2, kind: input, shape index: {}]
  %s3 = inlined_call_operand.vmem [shape: f32[1,128], index: 3, kind: input, shape index: {}]
  %s4 = inlined_call_operand.vmem [shape: f32[1,128], index: 4, kind: input, shape index: {}]
  %s5 = inlined_call_operand.hbm [shape: f32[8,128], index: 5, kind: output, shape index: {}]
  %s6 = sld [smem:[#allocation0]]
  $region34: #{concat_linear.1} parent=0
    _
  %s8 = ssub.s32 1, %s6
  %s9 = scalar_select 0, %s8, %s6
  $region1: #{concat_linear.1} parent=0
    #allocation2 [shape = 'u8[16384]{0}', space=vmem, size = 0x4000, scoped, tag = 'input window, operand 2, single buffered']
    #allocation3 [shape = 's32[1]{0}', space=sflag, size = 0x4, scoped, tag = 'scoped memory for concat_linear.1']
    #allocation4 [shape = 's32[1]{0}', space=sflag, size = 0x4, scoped, tag = 'scoped memory for concat_linear.1']
    #allocation5 [shape = 'u8[4096]{0}', space=vmem, size = 0x1000, scoped, tag = 'output window, operand 0, single buffered']
    %10 = vsyncpa [#allocation3], 0
    %11 = vsyncpa [#allocation4], 0
    // Predicated region
    $region2: #{concat_linear.1} parent=1 // pred_check
      _
    $region3: #{concat_linear.1} parent=1 // pred_check_branch
      %13 = sbr.rel (0) target = $region5
    $region4: #{concat_linear.1} parent=1 // pred_region
      _
    $region5: #{concat_linear.1} parent=1 // pred_fallthru
      _
    // Predicated region
    $region6: #{concat_linear.1} parent=1 // pred_check
      _
    $region7: #{concat_linear.1} parent=1 // pred_check_branch
      %15 = sbr.rel (0) target = $region9
    $region8: #{concat_linear.1} parent=1 // pred_region
      _
    $region9: #{concat_linear.1} parent=1 // pred_fallthru
      _
    // Predicated region
    $region10: #{concat_linear.1} parent=1 // pred_check
      _
    $region11: #{concat_linear.1} parent=1 // pred_check_branch
      %17 = sbr.rel (0) target = $region13
    $region12: #{concat_linear.1} parent=1 // pred_region
      %s19 = ssub.s32 512, 512
      %20 = vsyncadd [#allocation3], %s19
      %s21 = sshll.u32 [#allocation2], 4
      %s22 = int_to_ptr.vmem [resolvable:$true] %s21
      %27 = dma.hbm_to_vmem [thread:$0]  %s2, 512, %s22, [#allocation3], 128, 128, 8
    $region13: #{concat_linear.1} parent=1 // pred_fallthru
      _
    // Predicated region
    $region14: #{concat_linear.1} parent=1 // pred_check
      _
    $region15: #{concat_linear.1} parent=1 // pred_check_branch
      %29 = sbr.rel (0) target = $region17
    $region16: #{concat_linear.1} parent=1 // pred_region
      _
    $region17: #{concat_linear.1} parent=1 // pred_fallthru
      _
    // Predicated region
    $region18: #{concat_linear.1} parent=1 // pred_check
      _
    $region19: #{concat_linear.1} parent=1 // pred_check_branch
      %31 = sbr.rel (0) target = $region21
    $region20: #{concat_linear.1} parent=1 // pred_region
      _
    $region21: #{concat_linear.1} parent=1 // pred_fallthru
      _
    // Predicated region
    $region22: #{concat_linear.1} parent=1 // pred_check
      _
    $region23: #{concat_linear.1} parent=1 // pred_check_branch
      %33 = sbr.rel (0) target = $region25
    $region24: #{concat_linear.1} parent=1 // pred_region
      %34 = dma.done [#allocation3], 512
    $region25: #{concat_linear.1} parent=1 // pred_fallthru
      _
    %v35 = vld [vmem:[%s1] sm:$0xff]
    %v36 = vld [vmem:[#allocation2] sm:$0xff]
    %v37 = vld [vmem:[#allocation2 + $0x8] sm:$0xff]
    %v38 = vld [vmem:[#allocation2 + $0x10] sm:$0xff]
    %v39 = vld [vmem:[#allocation2 + $0x18] sm:$0xff]
    %v40 = vld [vmem:[%s0] sm:$0xff]
    %v41 = vld [vmem:[%s3] sm:$0x1]
    %43 = vset.pattern.permute.xlu0 0
    %44 = vperm.xlu0 %43, %v40
    %v45 = vpop.permute.xlu0 %44
    %v48 = vlaneseq
    %v49 = vshrl.u32 %v48, 7
    %v50 = vsub.s32 0, %v49
    %v51 = vrot.slane %v41, %v50
    %v53 = vmul.f32 %v45, %v51
    %v54 = vld [vmem:[%s4] sm:$0x1]
    %v56 = vlaneseq
    %v57 = vshrl.u32 %v56, 7
    %v58 = vsub.s32 0, %v57
    %v59 = vrot.slane %v54, %v58
    %v61 = vadd.f32 %v53, %v59
    %vm62 = vcmask 261120
    %v64 = vsel %vm62, %v35, 0
    %66 = vmatprep.subr.mxu0 0.0
    %67 = vmatpush1.msra.mxu0 %v36
    %68 = vmatprep.subr.mxu0 0.0
    %69 = vmatpush1.msra.mxu0 %v37
    %70 = vmatprep.subr.mxu0 0.0
    %71 = vmatpush1.msra.mxu0 %v38
    %72 = vmatprep.subr.mxu0 0.0
    %73 = vmatpush1.msra.mxu0 %v39
    %74 = vmatprep.subr.mxu0 0.0
    %75 = vmatpush1.msra.mxu0 0.0
    %76 = vmatprep.subr.mxu0 0.0
    %77 = vmatpush1.msra.mxu0 0.0
    %78 = vmatprep.subr.mxu0 0.0
    %79 = vmatpush1.msra.mxu0 0.0
    %80 = vmatprep.subr.mxu0 0.0
    %81 = vmatpush1.msra.mxu0 0.0
    %82 = vmatprep.subr.mxu0 0.0
    %83 = vmatpush1.msra.mxu0 0.0
    %84 = vmatprep.subr.mxu0 0.0
    %85 = vmatpush1.msra.mxu0 0.0
    %86 = vmatprep.subr.mxu0 0.0
    %87 = vmatpush1.msra.mxu0 0.0
    %88 = vmatprep.subr.mxu0 0.0
    %89 = vmatpush1.msra.mxu0 0.0
    %90 = vmatprep.subr.mxu0 0.0
    %91 = vmatpush1.msra.mxu0 0.0
    %92 = vmatprep.subr.mxu0 0.0
    %93 = vmatpush1.msra.mxu0 0.0
    %94 = vmatprep.subr.mxu0 0.0
    %95 = vmatpush1.msra.mxu0 0.0
    %96 = vmatprep.subr.mxu0 0.0
    %97 = vmatpush1.msra.mxu0 0.0
    %98 = vmatprep.subr.mxu0 0.0
    %99 = vmatpush1.msra.mxu0 0.0
    %100 = vmatprep.subr.mxu0 0.0
    %101 = vmatpush1.msra.mxu0 0.0
    %102 = vmatprep.subr.mxu0 0.0
    %103 = vmatpush1.msra.mxu0 0.0
    %104 = vmatprep.subr.mxu0 0.0
    %105 = vmatpush1.msra.mxu0 0.0
    %106 = vmatprep.subr.mxu0 0.0
    %107 = vmatpush1.msra.mxu0 0.0
    %108 = vmatprep.subr.mxu0 0.0
    %109 = vmatpush1.msra.mxu0 0.0
    %110 = vmatprep.subr.mxu0 0.0
    %111 = vmatpush1.msra.mxu0 0.0
    %112 = vmatprep.subr.mxu0 0.0
    %113 = vmatpush1.msra.mxu0 0.0
    %114 = vmatprep.subr.mxu0 0.0
    %115 = vmatpush1.msra.mxu0 0.0
    %116 = vmatprep.subr.mxu0 0.0
    %117 = vmatpush1.msra.mxu0 0.0
    %118 = vmatprep.subr.mxu0 0.0
    %119 = vmatpush1.msra.mxu0 0.0
    %120 = vmatprep.subr.mxu0 0.0
    %121 = vmatpush1.msra.mxu0 0.0
    %122 = vmatprep.subr.mxu0 0.0
    %123 = vmatpush1.msra.mxu0 0.0
    %124 = vmatprep.subr.mxu0 0.0
    %125 = vmatpush1.msra.mxu0 0.0
    %126 = vmatprep.subr.mxu0 0.0
    %127 = vmatpush1.msra.mxu0 0.0
    %128 = vmatprep.subr.mxu0 0.0
    %129 = vmatpush1.msra.mxu0 0.0
    %130 = vmatprep.mubr.f32.mxu0 0.0
    %131 = vmatmul.mubr.f32.gmra.mrb[0].mxu0 %v64
    %v132 = vpop.f32.mrb[0].mxu0
    %v133 = vadd.f32 %v61, %v132
    %v134 = vpop.f32.mrb[0].mxu0
    %135 = vdwg.mxu0
    %136 = vst [vmem:[#allocation5] sm:$0xff] %v133
    // Predicated region
    $region26: #{concat_linear.1} parent=1 // pred_check
      _
    $region27: #{concat_linear.1} parent=1 // pred_check_branch
      %138 = sbr.rel (0) target = $region29
    $region28: #{concat_linear.1} parent=1 // pred_region
      %s140 = ssub.s32 128, 128
      %141 = vsyncadd [#allocation4], %s140
      %s143 = sshll.u32 [#allocation5], 4
      %s144 = int_to_ptr.vmem [resolvable:$true] %s143
      %146 = dma.vmem_to_hbm [thread:$0]  %s144, 128, %s5, [#allocation4]
    $region29: #{concat_linear.1} parent=1 // pred_fallthru
      _
    // Predicated region
    $region30: #{concat_linear.1} parent=1 // pred_check
      _
    $region31: #{concat_linear.1} parent=1 // pred_check_branch
      %148 = sbr.rel (0) target = $region33
    $region32: #{concat_linear.1} parent=1 // pred_region
      %149 = dma.done [#allocation4], 128
    $region33: #{concat_linear.1} parent=1 // pred_fallthru
      _
    %150 = vsyncpa [#allocation3], 1
    %151 = vsyncpa [#allocation4], 1

</llo_original>
